<compile_context>
chip_gen: v7x
topology: tpu7x:2x2x1
jax: 0.10.0
libtpu: 0.0.40
codegen_flags: <defaults>
</compile_context>

<pallas_src>
import jax
import jax.numpy as jnp
from jax import lax
from jax.experimental import pallas as pl
from jax.experimental.pallas import tpu as pltpu


def attention_share_kernel(meta_ref, hid_ref, wq_ref, wkt_ref, wv_ref, wo_ref,
                           gamma_ref, beta_ref, attn_ref, weight_ref):
    # meta_ref: (TB, S, Dv)   hid_ref: (TB, Dk)
    # wq_ref:   (Dk, D)       wkt_ref: (D, Dv)    wv_ref: (Dv, D)   wo_ref: (D, D)
    # gamma/beta: (1, D)
    # attn_ref: (TB, D)       weight_ref: (TB, S)
    meta = meta_ref[...]                       # (TB, S, Dv)
    h = hid_ref[...]                           # (TB, Dk)

    # Query projection: full-height MXU matmul over the batch tile.
    q = jnp.dot(h, wq_ref[...], preferred_element_type=jnp.float32)     # (TB, D)

    # Reassociated key path: kq[b, v] = sum_d q[b, d] * Wk[v, d]  (Wk passed pre-transposed)
    kq = jnp.dot(q, wkt_ref[...], preferred_element_type=jnp.float32)   # (TB, Dv)

    D = wq_ref.shape[1]
    scale = 1.0 / jnp.sqrt(jnp.float32(D))
    # logits[b, s] = <meta[b, s, :], kq[b, :]> — VPU multiply + lane reduce (no MXU matvec)
    logits = jnp.sum(meta * kq[:, None, :], axis=-1) * scale             # (TB, S)

    # Softmax over the sequence axis (dim=1 of the PyTorch (B, S, 1) tensor).
    m = jnp.max(logits, axis=-1, keepdims=True)
    e = jnp.exp(logits - m)
    denom = jnp.sum(e, axis=-1, keepdims=True)
    w = e * pl.reciprocal(denom, approx=False)                           # (TB, S)

    # Reassociated value path: ctx[b, v] = sum_s w[b, s] * meta[b, s, v]
    ctx = jnp.sum(meta * w[:, :, None], axis=1)                          # (TB, Dv)
    att = jnp.dot(ctx, wv_ref[...], preferred_element_type=jnp.float32)  # (TB, D)

    # output_layer: Linear(no bias) -> Tanh -> LayerNorm -> Dropout(identity)
    out = jnp.dot(att, wo_ref[...], preferred_element_type=jnp.float32)  # (TB, D)
    out = jnp.tanh(out)
    mu = jnp.mean(out, axis=-1, keepdims=True)
    var = jnp.mean((out - mu) ** 2, axis=-1, keepdims=True)
    out = (out - mu) * lax.rsqrt(var + 1e-5)
    out = out * gamma_ref[...] + beta_ref[...]
    # TODO(synk): Dropout is treated as identity (inference/eval semantics).

    attn_ref[...] = out.astype(attn_ref.dtype)
    weight_ref[...] = w.astype(weight_ref.dtype)


def attention_share(meta_state, hidden_previous, wk, wq, wv, wo, gamma, beta,
                    *, block_b=8):
    """Returns (attention (B, D), weight (B, S, 1)) matching the PyTorch module."""
    B, S, Dv = meta_state.shape
    Dk = hidden_previous.shape[1]
    D = wk.shape[1]

    # Batch tile: TB rows per grid step. For B < block_b process the whole batch
    # in one step; otherwise pad B up to a multiple of block_b. (For large B,
    # raise block_b toward 128 subject to VMEM, keeping >=2 grid steps on v7x.)
    tb = max(1, min(block_b, B))
    n_blocks = pl.cdiv(B, tb)
    Bp = n_blocks * tb
    if Bp != B:
        pad = Bp - B
        meta_state = jnp.pad(meta_state, ((0, pad), (0, 0), (0, 0)))
        hidden_previous = jnp.pad(hidden_previous, ((0, pad), (0, 0)))

    wk_t = wk.T                      # (D, Dv): avoids an in-kernel transpose
    gamma2 = gamma.reshape(1, D)
    beta2 = beta.reshape(1, D)

    grid_spec = pltpu.PrefetchScalarGridSpec(
        num_scalar_prefetch=0,
        grid=(n_blocks,),
        in_specs=[
            pl.BlockSpec((tb, S, Dv), lambda b: (b, 0, 0)),   # meta_state tile
            pl.BlockSpec((tb, Dk),    lambda b: (b, 0)),      # hidden_previous tile
            # Grid-invariant operands (constant index map -> fetched once):
            pl.BlockSpec((Dk, D),     lambda b: (0, 0)),      # Wq
            pl.BlockSpec((D, Dv),     lambda b: (0, 0)),      # Wk^T
            pl.BlockSpec((Dv, D),     lambda b: (0, 0)),      # Wv
            pl.BlockSpec((D, D),      lambda b: (0, 0)),      # Wo
            pl.BlockSpec((1, D),      lambda b: (0, 0)),      # gamma
            pl.BlockSpec((1, D),      lambda b: (0, 0)),      # beta
        ],
        out_specs=[
            pl.BlockSpec((tb, D), lambda b: (b, 0)),          # attention (lane-dense)
            pl.BlockSpec((tb, S), lambda b: (b, 0)),          # weights   (lane-dense)
        ],
    )

    attn, weight = pl.pallas_call(
        attention_share_kernel,
        out_shape=(
            jax.ShapeDtypeStruct((Bp, D), jnp.float32),
            jax.ShapeDtypeStruct((Bp, S), jnp.float32),
        ),
        grid_spec=grid_spec,
        compiler_params=pltpu.CompilerParams(
            dimension_semantics=("parallel",)),
    )(meta_state, hidden_previous, wq, wk_t, wv, wo, gamma2, beta2)

    attn = attn[:B]
    weight = weight[:B].reshape(B, S, 1)   # module returns softmax as (B, S, 1)
    return attn, weight


def attention_share_ref(meta_state, hidden_previous, wk, wq, wv, wo, gamma, beta):
    # Pure-JAX reference mirroring the PyTorch forward exactly.
    K = meta_state @ wk                               # (B, S, D)
    Q = (hidden_previous @ wq)[:, :, None]            # (B, D, 1)
    V = jnp.swapaxes(meta_state @ wv, -1, -2)         # (B, D, S)
    D = wk.shape[1]
    logits = jnp.matmul(K, Q) / jnp.sqrt(jnp.float32(D))   # (B, S, 1)
    weight = jax.nn.softmax(logits, axis=1)
    mid = jnp.matmul(V, weight)[:, :, 0]              # (B, D)
    out = jnp.tanh(mid @ wo)
    mu = out.mean(-1, keepdims=True)
    var = ((out - mu) ** 2).mean(-1, keepdims=True)
    out = (out - mu) / jnp.sqrt(var + 1e-5) * gamma + beta
    return out, weight


if __name__ == "__main__":
    # Small shapes consistent with the module; B=16 with TB=8 exercises the
    # batch-blocked grid (2 steps -> both v7x TensorCores get work).
    B, S = 16, 8
    input_value_size = 32   # Dv
    input_key_size = 32     # Dk
    output_size = 32        # D (attention_size)

    key = jax.random.PRNGKey(0)
    k1, k2, k3, k4, k5, k6 = jax.random.split(key, 6)
    meta_state = jax.random.normal(k1, (B, S, input_value_size), jnp.float32)
    hidden_previous = jax.random.normal(k2, (B, input_key_size), jnp.float32)

    # Deterministic parameter init (shapes from __init__); stored as (in, out).
    wk = jax.random.normal(k3, (input_value_size, output_size), jnp.float32) * 0.1
    wq = jax.random.normal(k4, (input_key_size, output_size), jnp.float32) * 0.1
    wv = jax.random.normal(k5, (input_value_size, output_size), jnp.float32) * 0.1
    wo = jax.random.normal(k6, (output_size, output_size), jnp.float32) * 0.1
    gamma = jnp.ones((output_size,), jnp.float32)     # LayerNorm weight
    beta = jnp.zeros((output_size,), jnp.float32)     # LayerNorm bias

    attn, weight = attention_share(meta_state, hidden_previous,
                                   wk, wq, wv, wo, gamma, beta, block_b=8)
    jax.block_until_ready((attn, weight))

    attn_ref, weight_ref = attention_share_ref(meta_state, hidden_previous,
                                               wk, wq, wv, wo, gamma, beta)
    assert jnp.allclose(attn, attn_ref, atol=1e-4, rtol=1e-4), \
        float(jnp.max(jnp.abs(attn - attn_ref)))
    assert jnp.allclose(weight, weight_ref, atol=1e-4, rtol=1e-4), \
        float(jnp.max(jnp.abs(weight - weight_ref)))
    print("KERNEL_OK")
</pallas_src>

<mosaic_0001>
module attributes {stable_mosaic.version = 11 : i64} {
  func.func @attention_share_kernel(%arg0: i32, %arg1: memref<8x8x32xf32, #tpu.memory_space<vmem>>, %arg2: memref<8x32xf32, #tpu.memory_space<vmem>>, %arg3: memref<32x32xf32, #tpu.memory_space<vmem>>, %arg4: memref<32x32xf32, #tpu.memory_space<vmem>>, %arg5: memref<32x32xf32, #tpu.memory_space<vmem>>, %arg6: memref<32x32xf32, #tpu.memory_space<vmem>>, %arg7: memref<1x32xf32, #tpu.memory_space<vmem>>, %arg8: memref<1x32xf32, #tpu.memory_space<vmem>>, %arg9: memref<8x32xf32, #tpu.memory_space<vmem>>, %arg10: memref<8x8xf32, #tpu.memory_space<vmem>>) attributes {dimension_semantics = [#tpu.dimension_semantics<parallel>], iteration_bounds = array<i64: 2>, scalar_prefetch = 0 : i64, scratch_operands = 0 : i64, tpu.core_type = #tpu.core_type<tc>, window_params = [{transform_indices = @transform_0, window_bounds = array<i64: 8, 8, 32>}, {transform_indices = @transform_1, window_bounds = array<i64: 8, 32>}, {pipeline_mode = #tpu.pipeline_mode<synchronous>, transform_indices = @transform_2, window_bounds = array<i64: 32, 32>}, {pipeline_mode = #tpu.pipeline_mode<synchronous>, transform_indices = @transform_3, window_bounds = array<i64: 32, 32>}, {pipeline_mode = #tpu.pipeline_mode<synchronous>, transform_indices = @transform_4, window_bounds = array<i64: 32, 32>}, {pipeline_mode = #tpu.pipeline_mode<synchronous>, transform_indices = @transform_5, window_bounds = array<i64: 32, 32>}, {pipeline_mode = #tpu.pipeline_mode<synchronous>, transform_indices = @transform_6, window_bounds = array<i64: 1, 32>}, {pipeline_mode = #tpu.pipeline_mode<synchronous>, transform_indices = @transform_7, window_bounds = array<i64: 1, 32>}, {transform_indices = @transform_8, window_bounds = array<i64: 8, 32>}, {transform_indices = @transform_9, window_bounds = array<i64: 8, 8>}]} {
    %c0 = arith.constant 0 : index
    %c0_0 = arith.constant 0 : index
    %c0_1 = arith.constant 0 : index
    %0 = vector.load %arg1[%c0, %c0_0, %c0_1] : memref<8x8x32xf32, #tpu.memory_space<vmem>>, vector<8x8x32xf32>
    %c0_2 = arith.constant 0 : index
    %c0_3 = arith.constant 0 : index
    %1 = vector.load %arg2[%c0_2, %c0_3] : memref<8x32xf32, #tpu.memory_space<vmem>>, vector<8x32xf32>
    %c0_4 = arith.constant 0 : index
    %c0_5 = arith.constant 0 : index
    %2 = vector.load %arg3[%c0_4, %c0_5] : memref<32x32xf32, #tpu.memory_space<vmem>>, vector<32x32xf32>
    %cst = arith.constant dense<0.000000e+00> : vector<8x32xf32>
    %3 = tpu.matmul %1, %2, %cst {dimension_numbers = #tpu.dot_dimension_numbers<[1], [0], [0], [1], [0, 0, 1, 1], [], []>} : vector<8x32xf32>, vector<32x32xf32>, vector<8x32xf32> -> vector<8x32xf32>
    %c0_6 = arith.constant 0 : index
    %c0_7 = arith.constant 0 : index
    %4 = vector.load %arg4[%c0_6, %c0_7] : memref<32x32xf32, #tpu.memory_space<vmem>>, vector<32x32xf32>
    %cst_8 = arith.constant dense<0.000000e+00> : vector<8x32xf32>
    %5 = tpu.matmul %3, %4, %cst_8 {dimension_numbers = #tpu.dot_dimension_numbers<[1], [0], [0], [1], [0, 0, 1, 1], [], []>} : vector<8x32xf32>, vector<32x32xf32>, vector<8x32xf32> -> vector<8x32xf32>
    %cst_9 = arith.constant 3.200000e+01 : f32
    %6 = math.sqrt %cst_9 : f32
    %cst_10 = arith.constant 1.000000e+00 : f32
    %7 = arith.divf %cst_10, %6 : f32
    %8 = vector.shape_cast %5 : vector<8x32xf32> to vector<8x1x32xf32>
    %9 = vector.broadcast %8 : vector<8x1x32xf32> to vector<8x8x32xf32>
    %10 = arith.mulf %0, %9 : vector<8x8x32xf32>
    %cst_11 = arith.constant dense<0.000000e+00> : vector<8x8xf32>
    %11 = vector.multi_reduction <add>, %10, %cst_11 [2] : vector<8x8x32xf32> to vector<8x8xf32>
    %12 = vector.broadcast %7 : f32 to vector<8x8xf32>
    %13 = arith.mulf %11, %12 : vector<8x8xf32>
    %cst_12 = arith.constant dense<0xFF800000> : vector<8xf32>
    %14 = vector.multi_reduction <maximumf>, %13, %cst_12 [1] : vector<8x8xf32> to vector<8xf32>
    %15 = vector.shape_cast %14 : vector<8xf32> to vector<8x1xf32>
    %16 = vector.broadcast %15 : vector<8x1xf32> to vector<8x8xf32>
    %17 = arith.subf %13, %16 : vector<8x8xf32>
    %18 = math.exp %17 : vector<8x8xf32>
    %cst_13 = arith.constant dense<0.000000e+00> : vector<8xf32>
    %19 = vector.multi_reduction <add>, %18, %cst_13 [1] : vector<8x8xf32> to vector<8xf32>
    %20 = vector.shape_cast %19 : vector<8xf32> to vector<8x1xf32>
    %21 = tpu.reciprocal %20 : vector<8x1xf32> -> vector<8x1xf32>
    %22 = vector.broadcast %21 : vector<8x1xf32> to vector<8x8xf32>
    %23 = arith.mulf %18, %22 : vector<8x8xf32>
    %24 = vector.shape_cast %23 : vector<8x8xf32> to vector<8x8x1xf32>
    %25 = vector.broadcast %24 : vector<8x8x1xf32> to vector<8x8x32xf32>
    %26 = arith.mulf %0, %25 : vector<8x8x32xf32>
    %cst_14 = arith.constant dense<0.000000e+00> : vector<8x32xf32>
    %27 = vector.multi_reduction <add>, %26, %cst_14 [1] : vector<8x8x32xf32> to vector<8x32xf32>
    %c0_15 = arith.constant 0 : index
    %c0_16 = arith.constant 0 : index
    %28 = vector.load %arg5[%c0_15, %c0_16] : memref<32x32xf32, #tpu.memory_space<vmem>>, vector<32x32xf32>
    %cst_17 = arith.constant dense<0.000000e+00> : vector<8x32xf32>
    %29 = tpu.matmul %27, %28, %cst_17 {dimension_numbers = #tpu.dot_dimension_numbers<[1], [0], [0], [1], [0, 0, 1, 1], [], []>} : vector<8x32xf32>, vector<32x32xf32>, vector<8x32xf32> -> vector<8x32xf32>
    %c0_18 = arith.constant 0 : index
    %c0_19 = arith.constant 0 : index
    %30 = vector.load %arg6[%c0_18, %c0_19] : memref<32x32xf32, #tpu.memory_space<vmem>>, vector<32x32xf32>
    %cst_20 = arith.constant dense<0.000000e+00> : vector<8x32xf32>
    %31 = tpu.matmul %29, %30, %cst_20 {dimension_numbers = #tpu.dot_dimension_numbers<[1], [0], [0], [1], [0, 0, 1, 1], [], []>} : vector<8x32xf32>, vector<32x32xf32>, vector<8x32xf32> -> vector<8x32xf32>
    %32 = math.tanh %31 : vector<8x32xf32>
    %cst_21 = arith.constant dense<0.000000e+00> : vector<8xf32>
    %33 = vector.multi_reduction <add>, %32, %cst_21 [1] : vector<8x32xf32> to vector<8xf32>
    %34 = vector.shape_cast %33 : vector<8xf32> to vector<8x1xf32>
    %cst_22 = arith.constant 3.200000e+01 : f32
    %35 = vector.broadcast %cst_22 : f32 to vector<8x1xf32>
    %36 = arith.divf %34, %35 : vector<8x1xf32>
    %37 = vector.broadcast %36 : vector<8x1xf32> to vector<8x32xf32>
    %38 = arith.subf %32, %37 : vector<8x32xf32>
    %39 = arith.mulf %38, %38 : vector<8x32xf32>
    %cst_23 = arith.constant dense<0.000000e+00> : vector<8xf32>
    %40 = vector.multi_reduction <add>, %39, %cst_23 [1] : vector<8x32xf32> to vector<8xf32>
    %41 = vector.shape_cast %40 : vector<8xf32> to vector<8x1xf32>
    %cst_24 = arith.constant 3.200000e+01 : f32
    %42 = vector.broadcast %cst_24 : f32 to vector<8x1xf32>
    %43 = arith.divf %41, %42 : vector<8x1xf32>
    %44 = vector.broadcast %36 : vector<8x1xf32> to vector<8x32xf32>
    %45 = arith.subf %32, %44 : vector<8x32xf32>
    %cst_25 = arith.constant 9.99999974E-6 : f32
    %46 = vector.broadcast %cst_25 : f32 to vector<8x1xf32>
    %47 = arith.addf %43, %46 : vector<8x1xf32>
    %48 = math.rsqrt %47 : vector<8x1xf32>
    %49 = vector.broadcast %48 : vector<8x1xf32> to vector<8x32xf32>
    %50 = arith.mulf %45, %49 : vector<8x32xf32>
    %c0_26 = arith.constant 0 : index
    %c0_27 = arith.constant 0 : index
    %51 = vector.load %arg7[%c0_26, %c0_27] : memref<1x32xf32, #tpu.memory_space<vmem>>, vector<1x32xf32>
    %52 = vector.broadcast %51 : vector<1x32xf32> to vector<8x32xf32>
    %53 = arith.mulf %50, %52 : vector<8x32xf32>
    %c0_28 = arith.constant 0 : index
    %c0_29 = arith.constant 0 : index
    %54 = vector.load %arg8[%c0_28, %c0_29] : memref<1x32xf32, #tpu.memory_space<vmem>>, vector<1x32xf32>
    %55 = vector.broadcast %54 : vector<1x32xf32> to vector<8x32xf32>
    %56 = arith.addf %53, %55 : vector<8x32xf32>
    %c0_30 = arith.constant 0 : index
    %c0_31 = arith.constant 0 : index
    %57 = vector.load %arg9[%c0_30, %c0_31] : memref<8x32xf32, #tpu.memory_space<vmem>>, vector<8x32xf32>
    tpu.vector_store %arg9[%c0_30, %c0_31], %56 {strides = array<i32>} : memref<8x32xf32, #tpu.memory_space<vmem>>, vector<8x32xf32>,
    %c0_32 = arith.constant 0 : index
    %c0_33 = arith.constant 0 : index
    %58 = vector.load %arg10[%c0_32, %c0_33] : memref<8x8xf32, #tpu.memory_space<vmem>>, vector<8x8xf32>
    tpu.vector_store %arg10[%c0_32, %c0_33], %23 {strides = array<i32>} : memref<8x8xf32, #tpu.memory_space<vmem>>, vector<8x8xf32>,
    return
  }
  func.func @transform_0(%arg0: i32) -> (i32, i32, i32) {
    %c0_i32 = arith.constant 0 : i32
    %c0_i32_0 = arith.constant 0 : i32
    %c0_i32_1 = arith.constant 0 : i32
    return %arg0, %c0_i32, %c0_i32_0 : i32, i32, i32
  }
  func.func @transform_1(%arg0: i32) -> (i32, i32) {
    %c0_i32 = arith.constant 0 : i32
    %c0_i32_0 = arith.constant 0 : i32
    return %arg0, %c0_i32 : i32, i32
  }
  func.func @transform_2(%arg0: i32) -> (i32, i32) {
    %c0_i32 = arith.constant 0 : i32
    %c0_i32_0 = arith.constant 0 : i32
    %c0_i32_1 = arith.constant 0 : i32
    return %c0_i32, %c0_i32_0 : i32, i32
  }
  func.func @transform_3(%arg0: i32) -> (i32, i32) {
    %c0_i32 = arith.constant 0 : i32
    %c0_i32_0 = arith.constant 0 : i32
    %c0_i32_1 = arith.constant 0 : i32
    return %c0_i32, %c0_i32_0 : i32, i32
  }
  func.func @transform_4(%arg0: i32) -> (i32, i32) {
    %c0_i32 = arith.constant 0 : i32
    %c0_i32_0 = arith.constant 0 : i32
    %c0_i32_1 = arith.constant 0 : i32
    return %c0_i32, %c0_i32_0 : i32, i32
  }
  func.func @transform_5(%arg0: i32) -> (i32, i32) {
    %c0_i32 = arith.constant 0 : i32
    %c0_i32_0 = arith.constant 0 : i32
    %c0_i32_1 = arith.constant 0 : i32
    return %c0_i32, %c0_i32_0 : i32, i32
  }
  func.func @transform_6(%arg0: i32) -> (i32, i32) {
    %c0_i32 = arith.constant 0 : i32
    %c0_i32_0 = arith.constant 0 : i32
    %c0_i32_1 = arith.constant 0 : i32
    return %c0_i32, %c0_i32_0 : i32, i32
  }
  func.func @transform_7(%arg0: i32) -> (i32, i32) {
    %c0_i32 = arith.constant 0 : i32
    %c0_i32_0 = arith.constant 0 : i32
    %c0_i32_1 = arith.constant 0 : i32
    return %c0_i32, %c0_i32_0 : i32, i32
  }
  func.func @transform_8(%arg0: i32) -> (i32, i32) {
    %c0_i32 = arith.constant 0 : i32
    %c0_i32_0 = arith.constant 0 : i32
    return %arg0, %c0_i32 : i32, i32
  }
  func.func @transform_9(%arg0: i32) -> (i32, i32) {
    %c0_i32 = arith.constant 0 : i32
    %c0_i32_0 = arith.constant 0 : i32
    return %arg0, %c0_i32 : i32, i32
  }
}

</mosaic_0001>

<llo_original>
// kernel: tpu_custom_call.1
$region0: #{tpu_custom_call.1}
  #allocation0 [shape = 'u32[]', space=smem, size = 0x4, offset = 0x4, fixed_abs, tag = 'smem constant byte address 0x4 - core index']
  #allocation1 [shape = 'u32[144,128]{1,0:T(1,128)}', space=vmem, size = 0x12000, scoped, tag = 'internal scratch']
  %s0 = inlined_call_operand.hbm [shape: f32[16,8,32], index: 0, kind: input, shape index: {}]
  %s1 = inlined_call_operand.hbm [shape: f32[16,32], index: 1, kind: input, shape index: {}]
  %s2 = inlined_call_operand.hbm [shape: f32[32,32], index: 2, kind: input, shape index: {}]
  %s3 = inlined_call_operand.hbm [shape: f32[32,32], index: 3, kind: input, shape index: {}]
  %s4 = inlined_call_operand.hbm [shape: f32[32,32], index: 4, kind: input, shape index: {}]
  %s5 = inlined_call_operand.hbm [shape: f32[32,32], index: 5, kind: input, shape index: {}]
  %s6 = inlined_call_operand.vmem [shape: f32[1,32], index: 6, kind: input, shape index: {}]
  %s7 = inlined_call_operand.vmem [shape: f32[1,32], index: 7, kind: input, shape index: {}]
  %s8 = inlined_call_operand.hbm [shape: f32[16,32], index: 8, kind: output, shape index: {0}]
  %s9 = inlined_call_operand.vmem [shape: f32[16,8], index: 9, kind: output, shape index: {1}]
  %10 = xla_tuple %s8, %s9
  %s11 = sld [smem:[#allocation0]]
  $region97: #{tpu_custom_call.1} parent=0
    _
  %s13 = ssub.s32 1, %s11
  %s14 = scalar_select 0, %s13, %s11
  $region1: #{tpu_custom_call.1} parent=0
    #allocation2 [shape = 'u8[65536]{0}', space=vmem, size = 0x10000, scoped, tag = 'input window, operand 0']
    #allocation3 [shape = 's32[2]{0}', space=sflag, size = 0x8, scoped, tag = 'scoped memory for tpu_custom_call.1']
    #allocation4 [shape = 's32[2]{0}', space=sflag, size = 0x8, scoped, tag = 'scoped memory for tpu_custom_call.1']
    #allocation5 [shape = 'u8[8192]{0}', space=vmem, size = 0x2000, scoped, tag = 'input window, operand 1']
    #allocation6 [shape = 's32[2]{0}', space=sflag, size = 0x8, scoped, tag = 'scoped memory for tpu_custom_call.1']
    #allocation7 [shape = 'u8[16384]{0}', space=vmem, size = 0x4000, scoped, tag = 'input window, operand 2, single buffered']
    #allocation8 [shape = 'u8[16384]{0}', space=vmem, size = 0x4000, scoped, tag = 'input window, operand 3, single buffered']
    #allocation9 [shape = 's32[1]{0}', space=sflag, size = 0x4, scoped, tag = 'scoped memory for tpu_custom_call.1']
    #allocation10 [shape = 'u8[16384]{0}', space=vmem, size = 0x4000, scoped, tag = 'input window, operand 4, single buffered']
    #allocation11 [shape = 'u8[16384]{0}', space=vmem, size = 0x4000, scoped, tag = 'input window, operand 5, single buffered']
    #allocation12 [shape = 's32[1]{0}', space=sflag, size = 0x4, scoped, tag = 'scoped memory for tpu_custom_call.1']
    #allocation13 [shape = 'u8[8192]{0}', space=vmem, size = 0x2000, scoped, tag = 'output window, operand 0']
    %15 = vsyncpa [#allocation3], 0
    %s16 = scalar_lea.sflag [#allocation3], 1
    %17 = vsyncpa %s16, 0
    %18 = vsyncpa [#allocation6], 0
    %s19 = scalar_lea.sflag [#allocation6], 1
    %20 = vsyncpa %s19, 0
    %21 = vsyncpa [#allocation9], 0
    %22 = vsyncpa [#allocation12], 0
    %23 = vsyncpa [#allocation4], 0
    %s24 = scalar_lea.sflag [#allocation4], 1
    %25 = vsyncpa %s24, 0
    loop: start=0, step=1, limit=4
    $region2: #{tpu_custom_call.1} parent=1 // loop_pre_header
      _
    $region3: #{tpu_custom_call.1} parent=1 // loop_header
      %s27 = sphi 0, %s31
      %p28 = scmp.ge.s32.totalorder %s27, 4
      %s37 = sphi 0, %s39
      %s40 = sphi 0, %s37
      %s41 = sphi 0, %s40
      %s57 = sphi 0, %s41
      %s63 = sphi 0, %s65
      %s66 = sphi 0, %s63
      %s67 = sphi 0, %s66
      %s83 = sphi 0, %s67
      %s87 = sphi 0, %s87
      %s89 = sphi 0, %s87
      %s90 = sphi 0, %s89
      %s104 = sphi 0, %s90
      %s108 = sphi 0, %s108
      %s110 = sphi 0, %s108
      %s111 = sphi 0, %s110
      %s125 = sphi 0, %s111
      %s129 = sphi 0, %s129
      %s131 = sphi 0, %s129
      %s132 = sphi 0, %s131
      %s146 = sphi 0, %s132
      %s150 = sphi 0, %s150
      %s152 = sphi 0, %s150
      %s153 = sphi 0, %s152
      %s167 = sphi 0, %s153
      %s171 = sphi 0, %s171
      %s173 = sphi 0, %s171
      %s174 = sphi 0, %s173
      %s188 = sphi 0, %s174
      %s192 = sphi 0, %s192
      %s194 = sphi 0, %s192
      %s195 = sphi 0, %s194
      %s209 = sphi 0, %s195
      %s215 = sphi 0, %s217
      %s218 = sphi 0, %s215
      %s219 = sphi 0, %s218
      %s235 = sphi 0, %s219
      %s241 = sphi 0, %s243
      %s244 = sphi 0, %s241
      %s245 = sphi 0, %s244
      %s261 = sphi 0, %s245
    $region4: #{tpu_custom_call.1} parent=1 // loop_header_branch
      %30 = sbr.rel (%p28) target = $region8
    $region5: #{tpu_custom_call.1} parent=1 // loop_body
      %s32 = ssub.s32 %s27, 1
      %s33 = ssub.s32 %s27, 2
      %s34 = sadd.s32 %s27, 1
      %s35 = ssub.s32 %s27, %s34
      %p36 = scmp.eq.s32.totalorder %s35, 0
      %s38 = sadd.s32 %s37, 1
      %s39 = scalar_select %p36, %s37, %s38
      %p42 = pneg %p36
      %p43 = scmp.eq.s32.totalorder %s27, 1
      %p44 = por %p42, %p43
      %p45 = scmp.ne.s32.totalorder %s37, %s40
      %p46 = scmp.eq.s32.totalorder %s27, 0
      %p47 = por %p45, %p46
      %p48 = scmp.ne.s32.totalorder %s37, %s40
      %p49 = scmp.eq.s32.totalorder %s32, 1
      %p50 = por %p48, %p49
      %p51 = scmp.ne.s32.totalorder %s40, %s41
      %p52 = scmp.eq.s32.totalorder %s32, 0
      %p53 = por %p51, %p52
      %p54 = scmp.ne.s32.totalorder %s40, %s41
      %p55 = scmp.eq.s32.totalorder %s33, 1
      %p56 = por %p54, %p55
      %p58 = scmp.ne.s32.totalorder %s41, %s57
      %p59 = scmp.eq.s32.totalorder %s33, 0
      %p60 = por %p58, %p59
      %s61 = ssub.s32 %s27, %s34
      %p62 = scmp.eq.s32.totalorder %s61, 0
      %s64 = sadd.s32 %s63, 1
      %s65 = scalar_select %p62, %s63, %s64
      %p68 = pneg %p62
      %p69 = scmp.eq.s32.totalorder %s27, 1
      %p70 = por %p68, %p69
      %p71 = scmp.ne.s32.totalorder %s63, %s66
      %p72 = scmp.eq.s32.totalorder %s27, 0
      %p73 = por %p71, %p72
      %p74 = scmp.ne.s32.totalorder %s63, %s66
      %p75 = scmp.eq.s32.totalorder %s32, 1
      %p76 = por %p74, %p75
      %p77 = scmp.ne.s32.totalorder %s66, %s67
      %p78 = scmp.eq.s32.totalorder %s32, 0
      %p79 = por %p77, %p78
      %p80 = scmp.ne.s32.totalorder %s66, %s67
      %p81 = scmp.eq.s32.totalorder %s33, 1
      %p82 = por %p80, %p81
      %p84 = scmp.ne.s32.totalorder %s67, %s83
      %p85 = scmp.eq.s32.totalorder %s33, 0
      %p86 = por %p84, %p85
      %s88 = sadd.s32 %s87, 1
      %p91 = scmp.eq.s32.totalorder %s27, 1
      %p92 = scmp.ne.s32.totalorder %s87, %s89
      %p93 = scmp.eq.s32.totalorder %s27, 0
      %p94 = por %p92, %p93
      %p95 = scmp.ne.s32.totalorder %s87, %s89
      %p96 = scmp.eq.s32.totalorder %s32, 1
      %p97 = por %p95, %p96
      %p98 = scmp.ne.s32.totalorder %s89, %s90
      %p99 = scmp.eq.s32.totalorder %s32, 0
      %p100 = por %p98, %p99
      %p101 = scmp.ne.s32.totalorder %s89, %s90
      %p102 = scmp.eq.s32.totalorder %s33, 1
      %p103 = por %p101, %p102
      %p105 = scmp.ne.s32.totalorder %s90, %s104
      %p106 = scmp.eq.s32.totalorder %s33, 0
      %p107 = por %p105, %p106
      %s109 = sadd.s32 %s108, 1
      %p112 = scmp.eq.s32.totalorder %s27, 1
      %p113 = scmp.ne.s32.totalorder %s108, %s110
      %p114 = scmp.eq.s32.totalorder %s27, 0
      %p115 = por %p113, %p114
      %p116 = scmp.ne.s32.totalorder %s108, %s110
      %p117 = scmp.eq.s32.totalorder %s32, 1
      %p118 = por %p116, %p117
      %p119 = scmp.ne.s32.totalorder %s110, %s111
      %p120 = scmp.eq.s32.totalorder %s32, 0
      %p121 = por %p119, %p120
      %p122 = scmp.ne.s32.totalorder %s110, %s111
      %p123 = scmp.eq.s32.totalorder %s33, 1
      %p124 = por %p122, %p123
      %p126 = scmp.ne.s32.totalorder %s111, %s125
      %p127 = scmp.eq.s32.totalorder %s33, 0
      %p128 = por %p126, %p127
      %s130 = sadd.s32 %s129, 1
      %p133 = scmp.eq.s32.totalorder %s27, 1
      %p134 = scmp.ne.s32.totalorder %s129, %s131
      %p135 = scmp.eq.s32.totalorder %s27, 0
      %p136 = por %p134, %p135
      %p137 = scmp.ne.s32.totalorder %s129, %s131
      %p138 = scmp.eq.s32.totalorder %s32, 1
      %p139 = por %p137, %p138
      %p140 = scmp.ne.s32.totalorder %s131, %s132
      %p141 = scmp.eq.s32.totalorder %s32, 0
      %p142 = por %p140, %p141
      %p143 = scmp.ne.s32.totalorder %s131, %s132
      %p144 = scmp.eq.s32.totalorder %s33, 1
      %p145 = por %p143, %p144
      %p147 = scmp.ne.s32.totalorder %s132, %s146
      %p148 = scmp.eq.s32.totalorder %s33, 0
      %p149 = por %p147, %p148
      %s151 = sadd.s32 %s150, 1
      %p154 = scmp.eq.s32.totalorder %s27, 1
      %p155 = scmp.ne.s32.totalorder %s150, %s152
      %p156 = scmp.eq.s32.totalorder %s27, 0
      %p157 = por %p155, %p156
      %p158 = scmp.ne.s32.totalorder %s150, %s152
      %p159 = scmp.eq.s32.totalorder %s32, 1
      %p160 = por %p158, %p159
      %p161 = scmp.ne.s32.totalorder %s152, %s153
      %p162 = scmp.eq.s32.totalorder %s32, 0
      %p163 = por %p161, %p162
      %p164 = scmp.ne.s32.totalorder %s152, %s153
      %p165 = scmp.eq.s32.totalorder %s33, 1
      %p166 = por %p164, %p165
      %p168 = scmp.ne.s32.totalorder %s153, %s167
      %p169 = scmp.eq.s32.totalorder %s33, 0
      %p170 = por %p168, %p169
      %s172 = sadd.s32 %s171, 1
      %p175 = scmp.eq.s32.totalorder %s27, 1
      %p176 = scmp.ne.s32.totalorder %s171, %s173
      %p177 = scmp.eq.s32.totalorder %s27, 0
      %p178 = por %p176, %p177
      %p179 = scmp.ne.s32.totalorder %s171, %s173
      %p180 = scmp.eq.s32.totalorder %s32, 1
      %p181 = por %p179, %p180
      %p182 = scmp.ne.s32.totalorder %s173, %s174
      %p183 = scmp.eq.s32.totalorder %s32, 0
      %p184 = por %p182, %p183
      %p185 = scmp.ne.s32.totalorder %s173, %s174
      %p186 = scmp.eq.s32.totalorder %s33, 1
      %p187 = por %p185, %p186
      %p189 = scmp.ne.s32.totalorder %s174, %s188
      %p190 = scmp.eq.s32.totalorder %s33, 0
      %p191 = por %p189, %p190
      %s193 = sadd.s32 %s192, 1
      %p196 = scmp.eq.s32.totalorder %s27, 1
      %p197 = scmp.ne.s32.totalorder %s192, %s194
      %p198 = scmp.eq.s32.totalorder %s27, 0
      %p199 = por %p197, %p198
      %p200 = scmp.ne.s32.totalorder %s192, %s194
      %p201 = scmp.eq.s32.totalorder %s32, 1
      %p202 = por %p200, %p201
      %p203 = scmp.ne.s32.totalorder %s194, %s195
      %p204 = scmp.eq.s32.totalorder %s32, 0
      %p205 = por %p203, %p204
      %p206 = scmp.ne.s32.totalorder %s194, %s195
      %p207 = scmp.eq.s32.totalorder %s33, 1
      %p208 = por %p206, %p207
      %p210 = scmp.ne.s32.totalorder %s195, %s209
      %p211 = scmp.eq.s32.totalorder %s33, 0
      %p212 = por %p210, %p211
      %s213 = ssub.s32 %s27, %s34
      %p214 = scmp.eq.s32.totalorder %s213, 0
      %s216 = sadd.s32 %s215, 1
      %s217 = scalar_select %p214, %s215, %s216
      %p220 = pneg %p214
      %p221 = scmp.eq.s32.totalorder %s27, 1
      %p222 = por %p220, %p221
      %p223 = scmp.ne.s32.totalorder %s215, %s218
      %p224 = scmp.eq.s32.totalorder %s27, 0
      %p225 = por %p223, %p224
      %p226 = scmp.ne.s32.totalorder %s215, %s218
      %p227 = scmp.eq.s32.totalorder %s32, 1
      %p228 = por %p226, %p227
      %p229 = scmp.ne.s32.totalorder %s218, %s219
      %p230 = scmp.eq.s32.totalorder %s32, 0
      %p231 = por %p229, %p230
      %p232 = scmp.ne.s32.totalorder %s218, %s219
      %p233 = scmp.eq.s32.totalorder %s33, 1
      %p234 = por %p232, %p233
      %p236 = scmp.ne.s32.totalorder %s219, %s235
      %p237 = scmp.eq.s32.totalorder %s33, 0
      %p238 = por %p236, %p237
      %s239 = ssub.s32 %s27, %s34
      %p240 = scmp.eq.s32.totalorder %s239, 0
      %s242 = sadd.s32 %s241, 1
      %s243 = scalar_select %p240, %s241, %s242
      %p246 = pneg %p240
      %p247 = scmp.eq.s32.totalorder %s27, 1
      %p248 = por %p246, %p247
      %p249 = scmp.ne.s32.totalorder %s241, %s244
      %p250 = scmp.eq.s32.totalorder %s27, 0
      %p251 = por %p249, %p250
      %p252 = scmp.ne.s32.totalorder %s241, %s244
      %p253 = scmp.eq.s32.totalorder %s32, 1
      %p254 = por %p252, %p253
      %p255 = scmp.ne.s32.totalorder %s244, %s245
      %p256 = scmp.eq.s32.totalorder %s32, 0
      %p257 = por %p255, %p256
      %p258 = scmp.ne.s32.totalorder %s244, %s245
      %p259 = scmp.eq.s32.totalorder %s33, 1
      %p260 = por %p258, %p259
      %p262 = scmp.ne.s32.totalorder %s245, %s261
      %p263 = scmp.eq.s32.totalorder %s33, 0
      %p264 = por %p262, %p263
      %p265 = scmp.le.s32.totalorder 1, %s27
      %p266 = scmp.lt.s32.totalorder %s27, 3
      %p267 = pnand %p265, %p266
      %p268 = pneg %p267
      // Predicated region
      $region9: #{tpu_custom_call.1} parent=5 // pred_check
        _
      $region10: #{tpu_custom_call.1} parent=5 // pred_check_branch
        %270 = sbr.rel (%p267) target = $region12
      $region11: #{tpu_custom_call.1} parent=5 // pred_region
        %s271 = ssub.s32 %s27, 1
        // Predicated region
        $region13: #{tpu_custom_call.1} parent=11 // pred_check
          %p272 = pneg %p100
        $region14: #{tpu_custom_call.1} parent=11 // pred_check_branch
          %274 = sbr.rel (%p272) target = $region16
        $region15: #{tpu_custom_call.1} parent=11 // pred_region
          %s276 = ssub.s32 512, 512
          %277 = vsyncadd [#allocation6], %s276
          %s278 = sshll.u32 [#allocation7], 4
          %s279 = int_to_ptr.vmem [resolvable:$true] %s278
          %284 = dma.hbm_to_vmem [thread:$0]  %s2, 512, %s279, [#allocation6], 128, 128, 8
        $region16: #{tpu_custom_call.1} parent=11 // pred_fallthru
          _
        // Predicated region
        $region17: #{tpu_custom_call.1} parent=11 // pred_check
          %p285 = pneg %p121
        $region18: #{tpu_custom_call.1} parent=11 // pred_check_branch
          %287 = sbr.rel (%p285) target = $region20
        $region19: #{tpu_custom_call.1} parent=11 // pred_region
          %s289 = ssub.s32 512, 512
          %290 = vsyncadd [#allocation9], %s289
          %s291 = sshll.u32 [#allocation8], 4
          %s292 = int_to_ptr.vmem [resolvable:$true] %s291
          %297 = dma.hbm_to_vmem [thread:$0]  %s3, 512, %s292, [#allocation9], 128, 128, 8
        $region20: #{tpu_custom_call.1} parent=11 // pred_fallthru
          _
        // Predicated region
        $region21: #{tpu_custom_call.1} parent=11 // pred_check
          %p298 = pneg %p142
        $region22: #{tpu_custom_call.1} parent=11 // pred_check_branch
          %300 = sbr.rel (%p298) target = $region24
        $region23: #{tpu_custom_call.1} parent=11 // pred_region
          %s302 = ssub.s32 512, 512
          %303 = vsyncadd [#allocation9], %s302
          %s304 = sshll.u32 [#allocation10], 4
          %s305 = int_to_ptr.vmem [resolvable:$true] %s304
          %310 = dma.hbm_to_vmem [thread:$0]  %s4, 512, %s305, [#allocation9], 128, 128, 8
        $region24: #{tpu_custom_call.1} parent=11 // pred_fallthru
          _
        // Predicated region
        $region25: #{tpu_custom_call.1} parent=11 // pred_check
          %p311 = pneg %p163
        $region26: #{tpu_custom_call.1} parent=11 // pred_check_branch
          %313 = sbr.rel (%p311) target = $region28
        $region27: #{tpu_custom_call.1} parent=11 // pred_region
          %s315 = ssub.s32 512, 512
          %316 = vsyncadd [#allocation12], %s315
          %s317 = sshll.u32 [#allocation11], 4
          %s318 = int_to_ptr.vmem [resolvable:$true] %s317
          %323 = dma.hbm_to_vmem [thread:$0]  %s5, 512, %s318, [#allocation12], 128, 128, 8
        $region28: #{tpu_custom_call.1} parent=11 // pred_fallthru
          _
        // Predicated region
        $region29: #{tpu_custom_call.1} parent=11 // pred_check
          %p324 = pneg %p184
        $region30: #{tpu_custom_call.1} parent=11 // pred_check_branch
          %326 = sbr.rel (%p324) target = $region32
        $region31: #{tpu_custom_call.1} parent=11 // pred_region
          _
        $region32: #{tpu_custom_call.1} parent=11 // pred_fallthru
          _
        // Predicated region
        $region33: #{tpu_custom_call.1} parent=11 // pred_check
          %p327 = pneg %p205
        $region34: #{tpu_custom_call.1} parent=11 // pred_check_branch
          %329 = sbr.rel (%p327) target = $region36
        $region35: #{tpu_custom_call.1} parent=11 // pred_region
          _
        $region36: #{tpu_custom_call.1} parent=11 // pred_fallthru
          _
      $region12: #{tpu_custom_call.1} parent=5 // pred_fallthru
        _
      %p330 = scmp.lt.s32.totalorder %s27, 2
      // Predicated region
      $region37: #{tpu_custom_call.1} parent=5 // pred_check
        %p331 = pneg %p330
      $region38: #{tpu_custom_call.1} parent=5 // pred_check_branch
        %333 = sbr.rel (%p331) target = $region40
      $region39: #{tpu_custom_call.1} parent=5 // pred_region
        // Predicated region
        $region41: #{tpu_custom_call.1} parent=39 // pred_check
          %p334 = pneg %p47
        $region42: #{tpu_custom_call.1} parent=39 // pred_check_branch
          %336 = sbr.rel (%p334) target = $region44
        $region43: #{tpu_custom_call.1} parent=39 // pred_region
          %s337 = sand.u32 %s37, 1
          %s338 = scalar_lea.sflag [#allocation3], %s337
          %s339 = sand.u32 %s37, 1
          %s340 = smul.addr %s339, 64
          %s341 = scalar_lea.vmem [#allocation2], %s340
          %s342 = smul.u32 8, %s27
          %s344 = ssub.s32 1024, 1024
          %345 = vsyncadd %s338, %s344
          %s346 = smul.addr %s342, 128
          %s347 = scalar_lea.hbm %s0, %s346
          %s348 = sshll.u32 %s341, 4
          %s349 = int_to_ptr.vmem [resolvable:$true] %s348
          %354 = dma.hbm_to_vmem [thread:$0]  %s347, 1024, %s349, %s338, 128, 128, 8
        $region44: #{tpu_custom_call.1} parent=39 // pred_fallthru
          _
        // Predicated region
        $region45: #{tpu_custom_call.1} parent=39 // pred_check
          %p355 = pneg %p73
        $region46: #{tpu_custom_call.1} parent=39 // pred_check_branch
          %357 = sbr.rel (%p355) target = $region48
        $region47: #{tpu_custom_call.1} parent=39 // pred_region
          %s358 = sand.u32 %s27, 1
          %s359 = scalar_lea.sflag [#allocation6], %s358
          %s360 = sand.u32 %s63, 1
          %s361 = smul.addr %s360, 8
          %s362 = scalar_lea.vmem [#allocation5], %s361
          %s364 = ssub.s32 128, 128
          %365 = vsyncadd %s359, %s364
          %s366 = smul.addr %s27, 128
          %s367 = scalar_lea.hbm %s1, %s366
          %s369 = sshll.u32 %s362, 4
          %s370 = int_to_ptr.vmem [resolvable:$true] %s369
          %372 = dma.hbm_to_vmem [thread:$0]  %s367, 128, %s370, %s359
        $region48: #{tpu_custom_call.1} parent=39 // pred_fallthru
          _
      $region40: #{tpu_custom_call.1} parent=5 // pred_fallthru
        _
      %p373 = scmp.le.s32.totalorder 1, %s27
      %p374 = scmp.lt.s32.totalorder %s27, 3
      %p375 = pnand %p373, %p374
      %p376 = pneg %p375
      // Predicated region
      $region49: #{tpu_custom_call.1} parent=5 // pred_check
        _
      $region50: #{tpu_custom_call.1} parent=5 // pred_check_branch
        %378 = sbr.rel (%p375) target = $region52
      $region51: #{tpu_custom_call.1} parent=5 // pred_region
        %s379 = ssub.s32 %s27, 1
        %s380 = sand.u32 %s40, 1
        %s381 = scalar_lea.sflag [#allocation3], %s380
        %s382 = sand.u32 %s40, 1
        %s383 = smul.addr %s382, 64
        %s384 = scalar_lea.vmem [#allocation2], %s383
        // Predicated region
        $region53: #{tpu_custom_call.1} parent=51 // pred_check
          %p385 = pneg %p53
        $region54: #{tpu_custom_call.1} parent=51 // pred_check_branch
          %387 = sbr.rel (%p385) target = $region56
        $region55: #{tpu_custom_call.1} parent=51 // pred_region
          %388 = dma.done %s381, 1024
        $region56: #{tpu_custom_call.1} parent=51 // pred_fallthru
          _
        %s389 = sand.u32 %s32, 1
        %s390 = scalar_lea.sflag [#allocation6], %s389
        %s391 = sand.u32 %s66, 1
        %s392 = smul.addr %s391, 8
        %s393 = scalar_lea.vmem [#allocation5], %s392
        // Predicated region
        $region57: #{tpu_custom_call.1} parent=51 // pred_check
          %p394 = pneg %p79
        $region58: #{tpu_custom_call.1} parent=51 // pred_check_branch
          %396 = sbr.rel (%p394) target = $region60
        $region59: #{tpu_custom_call.1} parent=51 // pred_region
          %397 = dma.done %s390, 128
        $region60: #{tpu_custom_call.1} parent=51 // pred_fallthru
          _
        // Predicated region
        $region61: #{tpu_custom_call.1} parent=51 // pred_check
          %p398 = pneg %p100
        $region62: #{tpu_custom_call.1} parent=51 // pred_check_branch
          %400 = sbr.rel (%p398) target = $region64
        $region63: #{tpu_custom_call.1} parent=51 // pred_region
          %401 = dma.done [#allocation6], 512
        $region64: #{tpu_custom_call.1} parent=51 // pred_fallthru
          _
        // Predicated region
        $region65: #{tpu_custom_call.1} parent=51 // pred_check
          %p402 = pneg %p121
        $region66: #{tpu_custom_call.1} parent=51 // pred_check_branch
          %404 = sbr.rel (%p402) target = $region68
        $region67: #{tpu_custom_call.1} parent=51 // pred_region
          %405 = dma.done [#allocation9], 512
        $region68: #{tpu_custom_call.1} parent=51 // pred_fallthru
          _
        // Predicated region
        $region69: #{tpu_custom_call.1} parent=51 // pred_check
          %p406 = pneg %p142
        $region70: #{tpu_custom_call.1} parent=51 // pred_check_branch
          %408 = sbr.rel (%p406) target = $region72
        $region71: #{tpu_custom_call.1} parent=51 // pred_region
          %409 = dma.done [#allocation9], 512
        $region72: #{tpu_custom_call.1} parent=51 // pred_fallthru
          _
        // Predicated region
        $region73: #{tpu_custom_call.1} parent=51 // pred_check
          %p410 = pneg %p163
        $region74: #{tpu_custom_call.1} parent=51 // pred_check_branch
          %412 = sbr.rel (%p410) target = $region76
        $region75: #{tpu_custom_call.1} parent=51 // pred_region
          %413 = dma.done [#allocation12], 512
        $region76: #{tpu_custom_call.1} parent=51 // pred_fallthru
          _
        %s414 = sand.u32 %s40, 1
        %s415 = scalar_lea.sflag [#allocation3], %s414
        %s416 = sand.u32 %s40, 1
        %s417 = smul.addr %s416, 64
        %s418 = scalar_lea.vmem [#allocation2], %s417
        %p419 = pneg %p53
        %p420 = pneg %p50
        %s421 = sand.u32 %s32, 1
        %s422 = scalar_lea.sflag [#allocation6], %s421
        %s423 = sand.u32 %s66, 1
        %s424 = smul.addr %s423, 8
        %s425 = scalar_lea.vmem [#allocation5], %s424
        %p426 = pneg %p79
        %p427 = pneg %p76
        %p428 = pneg %p100
        %p429 = pneg %p97
        %p430 = pneg %p121
        %p431 = pneg %p118
        %p432 = pneg %p142
        %p433 = pneg %p139
        %p434 = pneg %p163
        %p435 = pneg %p160
        %p436 = pneg %p184
        %p437 = pneg %p181
        %p438 = pneg %p205
        %p439 = pneg %p202
        %p440 = pneg %p231
        %p441 = pneg %p228
        %s442 = sand.u32 %s218, 1
        %s443 = scalar_lea.sflag [#allocation4], %s442
        %s444 = sand.u32 %s218, 1
        %s445 = smul.addr %s444, 8
        %s446 = scalar_lea.vmem [#allocation13], %s445
        %p447 = pneg %p257
        %p448 = pneg %p254
        %p449 = scmp.lt.s32.totalorder %s32, 1
        %s450 = scalar_select %p449, %s32, 1
        %s451 = smul.addr %s450, 8
        %s452 = scalar_lea.vmem %s9, %s451
        %s453 = smul.u32 8, %s32
        %p454 = scmp.lt.s32.totalorder %s32, 1
        %s455 = scalar_select %p454, %s32, 1
        %s456 = smul.addr %s455, 8
        %s457 = scalar_lea.vmem %s9, %s456
        %v458 = vld [vmem:[%s384] sm:$0xff]
        %v459 = vld [vmem:[%s384 + $0x8] sm:$0xff]
        %v460 = vld [vmem:[%s384 + $0x10] sm:$0xff]
        %v461 = vld [vmem:[%s384 + $0x18] sm:$0xff]
        %v462 = vld [vmem:[%s384 + $0x20] sm:$0xff]
        %v463 = vld [vmem:[%s384 + $0x28] sm:$0xff]
        %v464 = vld [vmem:[%s384 + $0x30] sm:$0xff]
        %v465 = vld [vmem:[%s384 + $0x38] sm:$0xff]
        %v466 = vld [vmem:[%s393] sm:$0xff]
        %v467 = vld [vmem:[#allocation7] sm:$0xff]
        %v468 = vld [vmem:[#allocation7 + $0x8] sm:$0xff]
        %v469 = vld [vmem:[#allocation7 + $0x10] sm:$0xff]
        %v470 = vld [vmem:[#allocation7 + $0x18] sm:$0xff]
        %vm471 = vcmask 261120
        %v473 = vsel %vm471, %v466, 0
        %475 = vmatprep.subr.mxu0 0.0
        %476 = vmatpush1.msra.mxu0 %v467
        %477 = vmatprep.subr.mxu0 0.0
        %478 = vmatpush1.msra.mxu0 %v468
        %479 = vmatprep.subr.mxu0 0.0
        %480 = vmatpush1.msra.mxu0 %v469
        %481 = vmatprep.subr.mxu0 0.0
        %482 = vmatpush1.msra.mxu0 %v470
        %483 = vmatprep.subr.mxu0 0.0
        %484 = vmatpush1.msra.mxu0 0.0
        %485 = vmatprep.subr.mxu0 0.0
        %486 = vmatpush1.msra.mxu0 0.0
        %487 = vmatprep.subr.mxu0 0.0
        %488 = vmatpush1.msra.mxu0 0.0
        %489 = vmatprep.subr.mxu0 0.0
        %490 = vmatpush1.msra.mxu0 0.0
        %491 = vmatprep.subr.mxu0 0.0
        %492 = vmatpush1.msra.mxu0 0.0
        %493 = vmatprep.subr.mxu0 0.0
        %494 = vmatpush1.msra.mxu0 0.0
        %495 = vmatprep.subr.mxu0 0.0
        %496 = vmatpush1.msra.mxu0 0.0
        %497 = vmatprep.subr.mxu0 0.0
        %498 = vmatpush1.msra.mxu0 0.0
        %499 = vmatprep.subr.mxu0 0.0
        %500 = vmatpush1.msra.mxu0 0.0
        %501 = vmatprep.subr.mxu0 0.0
        %502 = vmatpush1.msra.mxu0 0.0
        %503 = vmatprep.subr.mxu0 0.0
        %504 = vmatpush1.msra.mxu0 0.0
        %505 = vmatprep.subr.mxu0 0.0
        %506 = vmatpush1.msra.mxu0 0.0
        %507 = vmatprep.subr.mxu0 0.0
        %508 = vmatpush1.msra.mxu0 0.0
        %509 = vmatprep.subr.mxu0 0.0
        %510 = vmatpush1.msra.mxu0 0.0
        %511 = vmatprep.subr.mxu0 0.0
        %512 = vmatpush1.msra.mxu0 0.0
        %513 = vmatprep.subr.mxu0 0.0
        %514 = vmatpush1.msra.mxu0 0.0
        %515 = vmatprep.subr.mxu0 0.0
        %516 = vmatpush1.msra.mxu0 0.0
        %517 = vmatprep.subr.mxu0 0.0
        %518 = vmatpush1.msra.mxu0 0.0
        %519 = vmatprep.subr.mxu0 0.0
        %520 = vmatpush1.msra.mxu0 0.0
        %521 = vmatprep.subr.mxu0 0.0
        %522 = vmatpush1.msra.mxu0 0.0
        %523 = vmatprep.subr.mxu0 0.0
        %524 = vmatpush1.msra.mxu0 0.0
        %525 = vmatprep.subr.mxu0 0.0
        %526 = vmatpush1.msra.mxu0 0.0
        %527 = vmatprep.subr.mxu0 0.0
        %528 = vmatpush1.msra.mxu0 0.0
        %529 = vmatprep.subr.mxu0 0.0
        %530 = vmatpush1.msra.mxu0 0.0
        %531 = vmatprep.subr.mxu0 0.0
        %532 = vmatpush1.msra.mxu0 0.0
        %533 = vmatprep.subr.mxu0 0.0
        %534 = vmatpush1.msra.mxu0 0.0
        %535 = vmatprep.subr.mxu0 0.0
        %536 = vmatpush1.msra.mxu0 0.0
        %537 = vmatprep.subr.mxu0 0.0
        %538 = vmatpush1.msra.mxu0 0.0
        %539 = vmatprep.mubr.f32.mxu0 0.0
        %540 = vmatmul.mubr.f32.gmra.mrb[0].mxu0 %v473
        %v541 = vpop.f32.mrb[0].mxu0
        %v542 = vadd.f32 0.0, %v541
        %v543 = vpop.f32.mrb[0].mxu0
        %544 = vdwg.mxu0
        %v545 = vld [vmem:[#allocation8] sm:$0xff]
        %v546 = vld [vmem:[#allocation8 + $0x8] sm:$0xff]
        %v547 = vld [vmem:[#allocation8 + $0x10] sm:$0xff]
        %v548 = vld [vmem:[#allocation8 + $0x18] sm:$0xff]
        %v550 = vsel %vm471, %v542, 0
        %552 = vmatprep.subr.mxu0 0.0
        %553 = vmatpush1.msra.mxu0 %v545
        %554 = vmatprep.subr.mxu0 0.0
        %555 = vmatpush1.msra.mxu0 %v546
        %556 = vmatprep.subr.mxu0 0.0
        %557 = vmatpush1.msra.mxu0 %v547
        %558 = vmatprep.subr.mxu0 0.0
        %559 = vmatpush1.msra.mxu0 %v548
        %560 = vmatprep.subr.mxu0 0.0
        %561 = vmatpush1.msra.mxu0 0.0
        %562 = vmatprep.subr.mxu0 0.0
        %563 = vmatpush1.msra.mxu0 0.0
        %564 = vmatprep.subr.mxu0 0.0
        %565 = vmatpush1.msra.mxu0 0.0
        %566 = vmatprep.subr.mxu0 0.0
        %567 = vmatpush1.msra.mxu0 0.0
        %568 = vmatprep.subr.mxu0 0.0
        %569 = vmatpush1.msra.mxu0 0.0
        %570 = vmatprep.subr.mxu0 0.0
        %571 = vmatpush1.msra.mxu0 0.0
        %572 = vmatprep.subr.mxu0 0.0
        %573 = vmatpush1.msra.mxu0 0.0
        %574 = vmatprep.subr.mxu0 0.0
        %575 = vmatpush1.msra.mxu0 0.0
        %576 = vmatprep.subr.mxu0 0.0
        %577 = vmatpush1.msra.mxu0 0.0
        %578 = vmatprep.subr.mxu0 0.0
        %579 = vmatpush1.msra.mxu0 0.0
        %580 = vmatprep.subr.mxu0 0.0
        %581 = vmatpush1.msra.mxu0 0.0
        %582 = vmatprep.subr.mxu0 0.0
        %583 = vmatpush1.msra.mxu0 0.0
        %584 = vmatprep.subr.mxu0 0.0
        %585 = vmatpush1.msra.mxu0 0.0
        %586 = vmatprep.subr.mxu0 0.0
        %587 = vmatpush1.msra.mxu0 0.0
        %588 = vmatprep.subr.mxu0 0.0
        %589 = vmatpush1.msra.mxu0 0.0
        %590 = vmatprep.subr.mxu0 0.0
        %591 = vmatpush1.msra.mxu0 0.0
        %592 = vmatprep.subr.mxu0 0.0
        %593 = vmatpush1.msra.mxu0 0.0
        %594 = vmatprep.subr.mxu0 0.0
        %595 = vmatpush1.msra.mxu0 0.0
        %596 = vmatprep.subr.mxu0 0.0
        %597 = vmatpush1.msra.mxu0 0.0
        %598 = vmatprep.subr.mxu0 0.0
        %599 = vmatpush1.msra.mxu0 0.0
        %600 = vmatprep.subr.mxu0 0.0
        %601 = vmatpush1.msra.mxu0 0.0
        %602 = vmatprep.subr.mxu0 0.0
        %603 = vmatpush1.msra.mxu0 0.0
        %604 = vmatprep.subr.mxu0 0.0
        %605 = vmatpush1.msra.mxu0 0.0
        %606 = vmatprep.subr.mxu0 0.0
        %607 = vmatpush1.msra.mxu0 0.0
        %608 = vmatprep.subr.mxu0 0.0
        %609 = vmatpush1.msra.mxu0 0.0
        %610 = vmatprep.subr.mxu0 0.0
        %611 = vmatpush1.msra.mxu0 0.0
        %612 = vmatprep.subr.mxu0 0.0
        %613 = vmatpush1.msra.mxu0 0.0
        %614 = vmatprep.subr.mxu0 0.0
        %615 = vmatpush1.msra.mxu0 0.0
        %616 = vmatprep.mubr.f32.mxu0 0.0
        %617 = vmatmul.mubr.f32.gmra.mrb[0].mxu0 %v550
        %v618 = vpop.f32.mrb[0].mxu0
        %v619 = vadd.f32 0.0, %v618
        %v620 = vpop.f32.mrb[0].mxu0
        %621 = vdwg.mxu0
        %v623 = vcombine.high %v619, %v619
        %v625 = vunpack.c.l.s4 1966171168
        %v626 = vunpack.c.0.s8 %v625
        %v627 = vlaneseq
        %v628 = vshrl.u32 %v627, 7
        %v629 = vsub.s32 %v626, %v628
        %v630 = vrot.slane %v619, %v629
        %v632 = vunpack.c.l.s4 1966171168
        %v633 = vunpack.c.0.s8 %v632
        %v634 = vlaneseq
        %v635 = vshrl.u32 %v634, 7
        %v636 = vsub.s32 %v633, %v635
        %v637 = vrot.slane %v623, %v636
        %v638 = vcombine.high %v630, %v630
        %v639 = vcombine.high %v637, %v637
        %v641 = vunpack.c.l.s4 1966171168
        %v642 = vunpack.c.0.s8 %v641
        %v643 = vlaneseq
        %v644 = vshrl.u32 %v643, 7
        %v645 = vsub.s32 %v642, %v644
        %v646 = vrot.slane %v630, %v645
        %v648 = vunpack.c.l.s4 1966171168
        %v649 = vunpack.c.0.s8 %v648
        %v650 = vlaneseq
        %v651 = vshrl.u32 %v650, 7
        %v652 = vsub.s32 %v649, %v651
        %v653 = vrot.slane %v637, %v652
        %v655 = vunpack.c.l.s4 1966171168
        %v656 = vunpack.c.0.s8 %v655
        %v657 = vlaneseq
        %v658 = vshrl.u32 %v657, 7
        %v659 = vsub.s32 %v656, %v658
        %v660 = vrot.slane %v638, %v659
        %v662 = vunpack.c.l.s4 1966171168
        %v663 = vunpack.c.0.s8 %v662
        %v664 = vlaneseq
        %v665 = vshrl.u32 %v664, 7
        %v666 = vsub.s32 %v663, %v665
        %v667 = vrot.slane %v639, %v666
        %v668 = vcombine.high %v646, %v646
        %v669 = vcombine.high %v653, %v653
        %v670 = vcombine.high %v660, %v660
        %v671 = vcombine.high %v667, %v667
        %v672 = vlaneseq
        %v673 = vshrl.u32 %v672, 7
        %v674 = vsub.s32 0, %v673
        %v675 = vrot.slane %v646, %v674
        %v676 = vlaneseq
        %v677 = vshrl.u32 %v676, 7
        %v678 = vsub.s32 0, %v677
        %v679 = vrot.slane %v660, %v678
        %v680 = vlaneseq
        %v681 = vshrl.u32 %v680, 7
        %v682 = vsub.s32 0, %v681
        %v683 = vrot.slane %v668, %v682
        %v684 = vlaneseq
        %v685 = vshrl.u32 %v684, 7
        %v686 = vsub.s32 0, %v685
        %v687 = vrot.slane %v670, %v686
        %v688 = vlaneseq
        %v689 = vshrl.u32 %v688, 7
        %v690 = vsub.s32 0, %v689
        %v691 = vrot.slane %v653, %v690
        %v692 = vlaneseq
        %v693 = vshrl.u32 %v692, 7
        %v694 = vsub.s32 0, %v693
        %v695 = vrot.slane %v667, %v694
        %v696 = vlaneseq
        %v697 = vshrl.u32 %v696, 7
        %v698 = vsub.s32 0, %v697
        %v699 = vrot.slane %v669, %v698
        %v700 = vlaneseq
        %v701 = vshrl.u32 %v700, 7
        %v702 = vsub.s32 0, %v701
        %v703 = vrot.slane %v671, %v702
        %v712 = vmul.f32 %v458, %v675
        %v713 = vmul.f32 %v459, %v679
        %v714 = vmul.f32 %v460, %v683
        %v715 = vmul.f32 %v461, %v687
        %v716 = vmul.f32 %v462, %v691
        %v717 = vmul.f32 %v463, %v695
        %v718 = vmul.f32 %v464, %v699
        %v719 = vmul.f32 %v465, %v703
        %v720 = vsel %vm471, %v712, 0.0
        %721 = vadd.xlane.f32.xlu0 %v720
        %v722 = vpop.xlane.xlu0 %721
        %v723 = vsel %vm471, %v713, 0.0
        %724 = vadd.xlane.f32.xlu0 %v723
        %v725 = vpop.xlane.xlu0 %724
        %v726 = vsel %vm471, %v714, 0.0
        %727 = vadd.xlane.f32.xlu0 %v726
        %v728 = vpop.xlane.xlu0 %727
        %v729 = vsel %vm471, %v715, 0.0
        %730 = vadd.xlane.f32.xlu0 %v729
        %v731 = vpop.xlane.xlu0 %730
        %v732 = vsel %vm471, %v716, 0.0
        %733 = vadd.xlane.f32.xlu0 %v732
        %v734 = vpop.xlane.xlu0 %733
        %v735 = vsel %vm471, %v717, 0.0
        %736 = vadd.xlane.f32.xlu0 %v735
        %v737 = vpop.xlane.xlu0 %736
        %v738 = vsel %vm471, %v718, 0.0
        %739 = vadd.xlane.f32.xlu0 %v738
        %v740 = vpop.xlane.xlu0 %739
        %v741 = vsel %vm471, %v719, 0.0
        %742 = vadd.xlane.f32.xlu0 %v741
        %v743 = vpop.xlane.xlu0 %742
        %v744 = vmul.f32 %v722, 0.17677669
        %v745 = vmul.f32 %v725, 0.17677669
        %v746 = vmul.f32 %v728, 0.17677669
        %v747 = vmul.f32 %v731, 0.17677669
        %v748 = vmul.f32 %v734, 0.17677669
        %v749 = vmul.f32 %v737, 0.17677669
        %v750 = vmul.f32 %v740, 0.17677669
        %v751 = vmul.f32 %v743, 0.17677669
        %v760 = vlaneseq
        %v761 = vand.u32 %v760, 127
        %v762 = vlaneseq
        %v763 = vshrl.u32 %v762, 7
        %v764 = vsub.s32 %v761, %v763
        %v765 = vrot.slane %v744, %v764
        %v766 = vlaneseq
        %v767 = vshrl.u32 %v766, 7
        %v768 = vsub.s32 %v761, %v767
        %v769 = vrot.slane %v745, %v768
        %v770 = vlaneseq
        %v771 = vshrl.u32 %v770, 7
        %v772 = vsub.s32 %v761, %v771
        %v773 = vrot.slane %v746, %v772
        %v774 = vlaneseq
        %v775 = vshrl.u32 %v774, 7
        %v776 = vsub.s32 %v761, %v775
        %v777 = vrot.slane %v747, %v776
        %v778 = vlaneseq
        %v779 = vshrl.u32 %v778, 7
        %v780 = vsub.s32 %v761, %v779
        %v781 = vrot.slane %v748, %v780
        %v782 = vlaneseq
        %v783 = vshrl.u32 %v782, 7
        %v784 = vsub.s32 %v761, %v783
        %v785 = vrot.slane %v749, %v784
        %v786 = vlaneseq
        %v787 = vshrl.u32 %v786, 7
        %v788 = vsub.s32 %v761, %v787
        %v789 = vrot.slane %v750, %v788
        %v790 = vlaneseq
        %v791 = vshrl.u32 %v790, 7
        %v792 = vsub.s32 %v761, %v791
        %v793 = vrot.slane %v751, %v792
        %vm794 = vcmask 1041409
        %v795 = vsel %vm794, %v769, %v765
        %vm796 = vcmask 1042434
        %v797 = vsel %vm796, %v773, %v795
        %vm798 = vcmask 1043459
        %v799 = vsel %vm798, %v777, %v797
        %vm800 = vcmask 1044484
        %v801 = vsel %vm800, %v781, %v799
        %vm802 = vcmask 1045509
        %v803 = vsel %vm802, %v785, %v801
        %vm804 = vcmask 1046534
        %v805 = vsel %vm804, %v789, %v803
        %vm806 = vcmask 1047559
        %v807 = vsel %vm806, %v793, %v805
        %vm809 = vcmask 64512
        %v810 = vsel %vm809, %v807, -inf
        %811 = vmax.xlane.f32.xlu0 %v810
        %v812 = vpop.xlane.xlu0 %811
        %v814 = vlaneseq
        %v815 = vshrl.u32 %v814, 7
        %v816 = vsub.s32 0, %v815
        %v817 = vrot.slane %v812, %v816
        %v818 = vlaneseq
        %v819 = vshrl.u32 %v818, 7
        %v820 = vsub.s32 1, %v819
        %v821 = vrot.slane %v812, %v820
        %v822 = vlaneseq
        %v823 = vshrl.u32 %v822, 7
        %v824 = vsub.s32 2, %v823
        %v825 = vrot.slane %v812, %v824
        %v826 = vlaneseq
        %v827 = vshrl.u32 %v826, 7
        %v828 = vsub.s32 3, %v827
        %v829 = vrot.slane %v812, %v828
        %v830 = vlaneseq
        %v831 = vshrl.u32 %v830, 7
        %v832 = vsub.s32 4, %v831
        %v833 = vrot.slane %v812, %v832
        %v834 = vlaneseq
        %v835 = vshrl.u32 %v834, 7
        %v836 = vsub.s32 5, %v835
        %v837 = vrot.slane %v812, %v836
        %v838 = vlaneseq
        %v839 = vshrl.u32 %v838, 7
        %v840 = vsub.s32 6, %v839
        %v841 = vrot.slane %v812, %v840
        %v842 = vlaneseq
        %v843 = vshrl.u32 %v842, 7
        %v844 = vsub.s32 7, %v843
        %v845 = vrot.slane %v812, %v844
        %v854 = vsub.f32 %v744, %v817
        %v855 = vsub.f32 %v745, %v821
        %v856 = vsub.f32 %v746, %v825
        %v857 = vsub.f32 %v747, %v829
        %v858 = vsub.f32 %v748, %v833
        %v859 = vsub.f32 %v749, %v837
        %v860 = vsub.f32 %v750, %v841
        %v861 = vsub.f32 %v751, %v845
        %v862 = vmul.f32 %v854, 1.442695
        %v863 = vpow.pop %v862
        %v864 = vmul.f32 %v855, 1.442695
        %v865 = vpow.pop %v864
        %v866 = vmul.f32 %v856, 1.442695
        %v867 = vpow.pop %v866
        %v868 = vmul.f32 %v857, 1.442695
        %v869 = vpow.pop %v868
        %v870 = vmul.f32 %v858, 1.442695
        %v871 = vpow.pop %v870
        %v872 = vmul.f32 %v859, 1.442695
        %v873 = vpow.pop %v872
        %v874 = vmul.f32 %v860, 1.442695
        %v875 = vpow.pop %v874
        %v876 = vmul.f32 %v861, 1.442695
        %v877 = vpow.pop %v876
        %886 = vset.pattern.permute.xlu0 0
        %887 = vperm.xlu0 %886, %v863
        %v888 = vpop.permute.xlu0 %887
        %889 = vset.pattern.permute.xlu0 0
        %890 = vperm.xlu0 %889, %v865
        %v891 = vpop.permute.xlu0 %890
        %892 = vset.pattern.permute.xlu0 0
        %893 = vperm.xlu0 %892, %v867
        %v894 = vpop.permute.xlu0 %893
        %895 = vset.pattern.permute.xlu0 0
        %896 = vperm.xlu0 %895, %v869
        %v897 = vpop.permute.xlu0 %896
        %898 = vset.pattern.permute.xlu0 0
        %899 = vperm.xlu0 %898, %v871
        %v900 = vpop.permute.xlu0 %899
        %901 = vset.pattern.permute.xlu0 0
        %902 = vperm.xlu0 %901, %v873
        %v903 = vpop.permute.xlu0 %902
        %904 = vset.pattern.permute.xlu0 0
        %905 = vperm.xlu0 %904, %v875
        %v906 = vpop.permute.xlu0 %905
        %907 = vset.pattern.permute.xlu0 0
        %908 = vperm.xlu0 %907, %v877
        %v909 = vpop.permute.xlu0 %908
        %v910 = vlaneseq
        %v911 = vshrl.u32 %v910, 7
        %v912 = vsub.s32 %v761, %v911
        %v913 = vrot.slane %v888, %v912
        %v914 = vlaneseq
        %v915 = vshrl.u32 %v914, 7
        %v916 = vsub.s32 %v761, %v915
        %v917 = vrot.slane %v891, %v916
        %v918 = vlaneseq
        %v919 = vshrl.u32 %v918, 7
        %v920 = vsub.s32 %v761, %v919
        %v921 = vrot.slane %v894, %v920
        %v922 = vlaneseq
        %v923 = vshrl.u32 %v922, 7
        %v924 = vsub.s32 %v761, %v923
        %v925 = vrot.slane %v897, %v924
        %v926 = vlaneseq
        %v927 = vshrl.u32 %v926, 7
        %v928 = vsub.s32 %v761, %v927
        %v929 = vrot.slane %v900, %v928
        %v930 = vlaneseq
        %v931 = vshrl.u32 %v930, 7
        %v932 = vsub.s32 %v761, %v931
        %v933 = vrot.slane %v903, %v932
        %v934 = vlaneseq
        %v935 = vshrl.u32 %v934, 7
        %v936 = vsub.s32 %v761, %v935
        %v937 = vrot.slane %v906, %v936
        %v938 = vlaneseq
        %v939 = vshrl.u32 %v938, 7
        %v940 = vsub.s32 %v761, %v939
        %v941 = vrot.slane %v909, %v940
        %v942 = vsel %vm794, %v917, %v913
        %v943 = vsel %vm796, %v921, %v942
        %v944 = vsel %vm798, %v925, %v943
        %v945 = vsel %vm800, %v929, %v944
        %v946 = vsel %vm802, %v933, %v945
        %v947 = vsel %vm804, %v937, %v946
        %v948 = vsel %vm806, %v941, %v947
        %v950 = vsel %vm809, %v948, 0.0
        %951 = vadd.xlane.f32.xlu0 %v950
        %v952 = vpop.xlane.xlu0 %951
        %v953 = vrcp.pop %v952
        %v955 = vlaneseq
        %v956 = vshrl.u32 %v955, 7
        %v957 = vsub.s32 0, %v956
        %v958 = vrot.slane %v953, %v957
        %v959 = vlaneseq
        %v960 = vshrl.u32 %v959, 7
        %v961 = vsub.s32 1, %v960
        %v962 = vrot.slane %v953, %v961
        %v963 = vlaneseq
        %v964 = vshrl.u32 %v963, 7
        %v965 = vsub.s32 2, %v964
        %v966 = vrot.slane %v953, %v965
        %v967 = vlaneseq
        %v968 = vshrl.u32 %v967, 7
        %v969 = vsub.s32 3, %v968
        %v970 = vrot.slane %v953, %v969
        %v971 = vlaneseq
        %v972 = vshrl.u32 %v971, 7
        %v973 = vsub.s32 4, %v972
        %v974 = vrot.slane %v953, %v973
        %v975 = vlaneseq
        %v976 = vshrl.u32 %v975, 7
        %v977 = vsub.s32 5, %v976
        %v978 = vrot.slane %v953, %v977
        %v979 = vlaneseq
        %v980 = vshrl.u32 %v979, 7
        %v981 = vsub.s32 6, %v980
        %v982 = vrot.slane %v953, %v981
        %v983 = vlaneseq
        %v984 = vshrl.u32 %v983, 7
        %v985 = vsub.s32 7, %v984
        %v986 = vrot.slane %v953, %v985
        %v995 = vmul.f32 %v863, %v958
        %v996 = vmul.f32 %v865, %v962
        %v997 = vmul.f32 %v867, %v966
        %v998 = vmul.f32 %v869, %v970
        %v999 = vmul.f32 %v871, %v974
        %v1000 = vmul.f32 %v873, %v978
        %v1001 = vmul.f32 %v875, %v982
        %v1002 = vmul.f32 %v877, %v986
        %1004 = vset.pattern.permute.xlu0 0
        %1005 = vperm.xlu0 %1004, %v995
        %v1006 = vpop.permute.xlu0 %1005
        %1009 = vset.pattern.permute.xlu0 0
        %1010 = vperm.xlu0 %1009, %v996
        %v1011 = vpop.permute.xlu0 %1010
        %1014 = vset.pattern.permute.xlu0 0
        %1015 = vperm.xlu0 %1014, %v997
        %v1016 = vpop.permute.xlu0 %1015
        %1019 = vset.pattern.permute.xlu0 0
        %1020 = vperm.xlu0 %1019, %v998
        %v1021 = vpop.permute.xlu0 %1020
        %1024 = vset.pattern.permute.xlu0 0
        %1025 = vperm.xlu0 %1024, %v999
        %v1026 = vpop.permute.xlu0 %1025
        %1029 = vset.pattern.permute.xlu0 0
        %1030 = vperm.xlu0 %1029, %v1000
        %v1031 = vpop.permute.xlu0 %1030
        %1034 = vset.pattern.permute.xlu0 0
        %1035 = vperm.xlu0 %1034, %v1001
        %v1036 = vpop.permute.xlu0 %1035
        %1039 = vset.pattern.permute.xlu0 0
        %1040 = vperm.xlu0 %1039, %v1002
        %v1041 = vpop.permute.xlu0 %1040
        %v1043 = vmul.f32 %v458, %v1006
        %v1044 = vmul.f32 %v459, %v1011
        %v1045 = vmul.f32 %v460, %v1016
        %v1046 = vmul.f32 %v461, %v1021
        %v1047 = vmul.f32 %v462, %v1026
        %v1048 = vmul.f32 %v463, %v1031
        %v1049 = vmul.f32 %v464, %v1036
        %v1050 = vmul.f32 %v465, %v1041
        %v1051 = vsel %vm471, %v1043, 0.0
        %v1052 = vrot.slane %v1051, 4
        %v1053 = vadd.f32 %v1051, %v1052
        %v1054 = vrot.slane %v1053, 2
        %v1055 = vadd.f32 %v1053, %v1054
        %v1056 = vrot.slane %v1055, 1
        %v1057 = vadd.f32 %v1055, %v1056
        %v1058 = vsel %vm471, %v1044, 0.0
        %v1059 = vrot.slane %v1058, 4
        %v1060 = vadd.f32 %v1058, %v1059
        %v1061 = vrot.slane %v1060, 2
        %v1062 = vadd.f32 %v1060, %v1061
        %v1063 = vrot.slane %v1062, 1
        %v1064 = vadd.f32 %v1062, %v1063
        %v1065 = vsel %vm471, %v1045, 0.0
        %v1066 = vrot.slane %v1065, 4
        %v1067 = vadd.f32 %v1065, %v1066
        %v1068 = vrot.slane %v1067, 2
        %v1069 = vadd.f32 %v1067, %v1068
        %v1070 = vrot.slane %v1069, 1
        %v1071 = vadd.f32 %v1069, %v1070
        %v1072 = vsel %vm471, %v1046, 0.0
        %v1073 = vrot.slane %v1072, 4
        %v1074 = vadd.f32 %v1072, %v1073
        %v1075 = vrot.slane %v1074, 2
        %v1076 = vadd.f32 %v1074, %v1075
        %v1077 = vrot.slane %v1076, 1
        %v1078 = vadd.f32 %v1076, %v1077
        %v1079 = vsel %vm471, %v1047, 0.0
        %v1080 = vrot.slane %v1079, 4
        %v1081 = vadd.f32 %v1079, %v1080
        %v1082 = vrot.slane %v1081, 2
        %v1083 = vadd.f32 %v1081, %v1082
        %v1084 = vrot.slane %v1083, 1
        %v1085 = vadd.f32 %v1083, %v1084
        %v1086 = vsel %vm471, %v1048, 0.0
        %v1087 = vrot.slane %v1086, 4
        %v1088 = vadd.f32 %v1086, %v1087
        %v1089 = vrot.slane %v1088, 2
        %v1090 = vadd.f32 %v1088, %v1089
        %v1091 = vrot.slane %v1090, 1
        %v1092 = vadd.f32 %v1090, %v1091
        %v1093 = vsel %vm471, %v1049, 0.0
        %v1094 = vrot.slane %v1093, 4
        %v1095 = vadd.f32 %v1093, %v1094
        %v1096 = vrot.slane %v1095, 2
        %v1097 = vadd.f32 %v1095, %v1096
        %v1098 = vrot.slane %v1097, 1
        %v1099 = vadd.f32 %v1097, %v1098
        %v1100 = vsel %vm471, %v1050, 0.0
        %v1101 = vrot.slane %v1100, 4
        %v1102 = vadd.f32 %v1100, %v1101
        %v1103 = vrot.slane %v1102, 2
        %v1104 = vadd.f32 %v1102, %v1103
        %v1105 = vrot.slane %v1104, 1
        %v1106 = vadd.f32 %v1104, %v1105
        %v1107 = vld [vmem:[#allocation10] sm:$0xff]
        %v1108 = vld [vmem:[#allocation10 + $0x8] sm:$0xff]
        %v1109 = vld [vmem:[#allocation10 + $0x10] sm:$0xff]
        %v1110 = vld [vmem:[#allocation10 + $0x18] sm:$0xff]
        %v1119 = vsel %vm794, %v1064, %v1057
        %v1120 = vsel %vm796, %v1071, %v1119
        %v1121 = vsel %vm798, %v1078, %v1120
        %v1122 = vsel %vm800, %v1085, %v1121
        %v1123 = vsel %vm802, %v1092, %v1122
        %v1124 = vsel %vm804, %v1099, %v1123
        %v1125 = vsel %vm806, %v1106, %v1124
        %v1126 = vsel %vm471, %v1125, 0
        %1128 = vmatprep.subr.mxu0 0.0
        %1129 = vmatpush1.msra.mxu0 %v1107
        %1130 = vmatprep.subr.mxu0 0.0
        %1131 = vmatpush1.msra.mxu0 %v1108
        %1132 = vmatprep.subr.mxu0 0.0
        %1133 = vmatpush1.msra.mxu0 %v1109
        %1134 = vmatprep.subr.mxu0 0.0
        %1135 = vmatpush1.msra.mxu0 %v1110
        %1136 = vmatprep.subr.mxu0 0.0
        %1137 = vmatpush1.msra.mxu0 0.0
        %1138 = vmatprep.subr.mxu0 0.0
        %1139 = vmatpush1.msra.mxu0 0.0
        %1140 = vmatprep.subr.mxu0 0.0
        %1141 = vmatpush1.msra.mxu0 0.0
        %1142 = vmatprep.subr.mxu0 0.0
        %1143 = vmatpush1.msra.mxu0 0.0
        %1144 = vmatprep.subr.mxu0 0.0
        %1145 = vmatpush1.msra.mxu0 0.0
        %1146 = vmatprep.subr.mxu0 0.0
        %1147 = vmatpush1.msra.mxu0 0.0
        %1148 = vmatprep.subr.mxu0 0.0
        %1149 = vmatpush1.msra.mxu0 0.0
        %1150 = vmatprep.subr.mxu0 0.0
        %1151 = vmatpush1.msra.mxu0 0.0
        %1152 = vmatprep.subr.mxu0 0.0
        %1153 = vmatpush1.msra.mxu0 0.0
        %1154 = vmatprep.subr.mxu0 0.0
        %1155 = vmatpush1.msra.mxu0 0.0
        %1156 = vmatprep.subr.mxu0 0.0
        %1157 = vmatpush1.msra.mxu0 0.0
        %1158 = vmatprep.subr.mxu0 0.0
        %1159 = vmatpush1.msra.mxu0 0.0
        %1160 = vmatprep.subr.mxu0 0.0
        %1161 = vmatpush1.msra.mxu0 0.0
        %1162 = vmatprep.subr.mxu0 0.0
        %1163 = vmatpush1.msra.mxu0 0.0
        %1164 = vmatprep.subr.mxu0 0.0
        %1165 = vmatpush1.msra.mxu0 0.0
        %1166 = vmatprep.subr.mxu0 0.0
        %1167 = vmatpush1.msra.mxu0 0.0
        %1168 = vmatprep.subr.mxu0 0.0
        %1169 = vmatpush1.msra.mxu0 0.0
        %1170 = vmatprep.subr.mxu0 0.0
        %1171 = vmatpush1.msra.mxu0 0.0
        %1172 = vmatprep.subr.mxu0 0.0
        %1173 = vmatpush1.msra.mxu0 0.0
        %1174 = vmatprep.subr.mxu0 0.0
        %1175 = vmatpush1.msra.mxu0 0.0
        %1176 = vmatprep.subr.mxu0 0.0
        %1177 = vmatpush1.msra.mxu0 0.0
        %1178 = vmatprep.subr.mxu0 0.0
        %1179 = vmatpush1.msra.mxu0 0.0
        %1180 = vmatprep.subr.mxu0 0.0
        %1181 = vmatpush1.msra.mxu0 0.0
        %1182 = vmatprep.subr.mxu0 0.0
        %1183 = vmatpush1.msra.mxu0 0.0
        %1184 = vmatprep.subr.mxu0 0.0
        %1185 = vmatpush1.msra.mxu0 0.0
        %1186 = vmatprep.subr.mxu0 0.0
        %1187 = vmatpush1.msra.mxu0 0.0
        %1188 = vmatprep.subr.mxu0 0.0
        %1189 = vmatpush1.msra.mxu0 0.0
        %1190 = vmatprep.subr.mxu0 0.0
        %1191 = vmatpush1.msra.mxu0 0.0
        %1192 = vmatprep.mubr.f32.mxu0 0.0
        %1193 = vmatmul.mubr.f32.gmra.mrb[0].mxu0 %v1126
        %v1194 = vpop.f32.mrb[0].mxu0
        %v1195 = vadd.f32 0.0, %v1194
        %v1196 = vpop.f32.mrb[0].mxu0
        %1197 = vdwg.mxu0
        %v1198 = vld [vmem:[#allocation11] sm:$0xff]
        %v1199 = vld [vmem:[#allocation11 + $0x8] sm:$0xff]
        %v1200 = vld [vmem:[#allocation11 + $0x10] sm:$0xff]
        %v1201 = vld [vmem:[#allocation11 + $0x18] sm:$0xff]
        %v1203 = vsel %vm471, %v1195, 0
        %1205 = vmatprep.subr.mxu0 0.0
        %1206 = vmatpush1.msra.mxu0 %v1198
        %1207 = vmatprep.subr.mxu0 0.0
        %1208 = vmatpush1.msra.mxu0 %v1199
        %1209 = vmatprep.subr.mxu0 0.0
        %1210 = vmatpush1.msra.mxu0 %v1200
        %1211 = vmatprep.subr.mxu0 0.0
        %1212 = vmatpush1.msra.mxu0 %v1201
        %1213 = vmatprep.subr.mxu0 0.0
        %1214 = vmatpush1.msra.mxu0 0.0
        %1215 = vmatprep.subr.mxu0 0.0
        %1216 = vmatpush1.msra.mxu0 0.0
        %1217 = vmatprep.subr.mxu0 0.0
        %1218 = vmatpush1.msra.mxu0 0.0
        %1219 = vmatprep.subr.mxu0 0.0
        %1220 = vmatpush1.msra.mxu0 0.0
        %1221 = vmatprep.subr.mxu0 0.0
        %1222 = vmatpush1.msra.mxu0 0.0
        %1223 = vmatprep.subr.mxu0 0.0
        %1224 = vmatpush1.msra.mxu0 0.0
        %1225 = vmatprep.subr.mxu0 0.0
        %1226 = vmatpush1.msra.mxu0 0.0
        %1227 = vmatprep.subr.mxu0 0.0
        %1228 = vmatpush1.msra.mxu0 0.0
        %1229 = vmatprep.subr.mxu0 0.0
        %1230 = vmatpush1.msra.mxu0 0.0
        %1231 = vmatprep.subr.mxu0 0.0
        %1232 = vmatpush1.msra.mxu0 0.0
        %1233 = vmatprep.subr.mxu0 0.0
        %1234 = vmatpush1.msra.mxu0 0.0
        %1235 = vmatprep.subr.mxu0 0.0
        %1236 = vmatpush1.msra.mxu0 0.0
        %1237 = vmatprep.subr.mxu0 0.0
        %1238 = vmatpush1.msra.mxu0 0.0
        %1239 = vmatprep.subr.mxu0 0.0
        %1240 = vmatpush1.msra.mxu0 0.0
        %1241 = vmatprep.subr.mxu0 0.0
        %1242 = vmatpush1.msra.mxu0 0.0
        %1243 = vmatprep.subr.mxu0 0.0
        %1244 = vmatpush1.msra.mxu0 0.0
        %1245 = vmatprep.subr.mxu0 0.0
        %1246 = vmatpush1.msra.mxu0 0.0
        %1247 = vmatprep.subr.mxu0 0.0
        %1248 = vmatpush1.msra.mxu0 0.0
        %1249 = vmatprep.subr.mxu0 0.0
        %1250 = vmatpush1.msra.mxu0 0.0
        %1251 = vmatprep.subr.mxu0 0.0
        %1252 = vmatpush1.msra.mxu0 0.0
        %1253 = vmatprep.subr.mxu0 0.0
        %1254 = vmatpush1.msra.mxu0 0.0
        %1255 = vmatprep.subr.mxu0 0.0
        %1256 = vmatpush1.msra.mxu0 0.0
        %1257 = vmatprep.subr.mxu0 0.0
        %1258 = vmatpush1.msra.mxu0 0.0
        %1259 = vmatprep.subr.mxu0 0.0
        %1260 = vmatpush1.msra.mxu0 0.0
        %1261 = vmatprep.subr.mxu0 0.0
        %1262 = vmatpush1.msra.mxu0 0.0
        %1263 = vmatprep.subr.mxu0 0.0
        %1264 = vmatpush1.msra.mxu0 0.0
        %1265 = vmatprep.subr.mxu0 0.0
        %1266 = vmatpush1.msra.mxu0 0.0
        %1267 = vmatprep.subr.mxu0 0.0
        %1268 = vmatpush1.msra.mxu0 0.0
        %1269 = vmatprep.mubr.f32.mxu0 0.0
        %1270 = vmatmul.mubr.f32.gmra.mrb[0].mxu0 %v1203
        %v1271 = vpop.f32.mrb[0].mxu0
        %v1272 = vadd.f32 0.0, %v1271
        %v1273 = vpop.f32.mrb[0].mxu0
        %1274 = vdwg.mxu0
        %v1275 = vtanh.pop %v1272
        %v1276 = vsel %vm471, %v1275, 0.0
        %1277 = vadd.xlane.f32.xlu0 %v1276
        %v1278 = vpop.xlane.xlu0 %1277
        %v1279 = vrcp.pop 32.0
        %v1280 = vmul.f32 %v1278, %v1279
        %v1281 = vsub.f32 %v1275, %v1280
        %v1282 = vmul.f32 %v1281, %v1281
        %v1283 = vsel %vm471, %v1282, 0.0
        %1284 = vadd.xlane.f32.xlu0 %v1283
        %v1285 = vpop.xlane.xlu0 %1284
        %v1286 = vmul.f32 %v1285, %v1279
        %v1287 = vadd.f32 %v1286, 1e-05
        %v1288 = vrsqrt.pop %v1287
        %v1289 = vmul.f32 %v1281, %v1288
        %v1290 = vld [vmem:[%s6] sm:$0x1]
        %v1292 = vlaneseq
        %v1293 = vshrl.u32 %v1292, 7
        %v1294 = vsub.s32 0, %v1293
        %v1295 = vrot.slane %v1290, %v1294
        %v1297 = vmul.f32 %v1289, %v1295
        %v1298 = vld [vmem:[%s7] sm:$0x1]
        %v1300 = vlaneseq
        %v1301 = vshrl.u32 %v1300, 7
        %v1302 = vsub.s32 0, %v1301
        %v1303 = vrot.slane %v1298, %v1302
        %v1305 = vadd.f32 %v1297, %v1303
        %1306 = vst.msk [vmem:[%s446] sm:$0xff] %vm471, %v1305
        %v1307 = vlaneseq
        %v1308 = vshrl.u32 %v1307, 7
        %v1309 = vsub.s32 %v761, %v1308
        %v1310 = vrot.slane %v1006, %v1309
        %v1311 = vlaneseq
        %v1312 = vshrl.u32 %v1311, 7
        %v1313 = vsub.s32 %v761, %v1312
        %v1314 = vrot.slane %v1011, %v1313
        %v1315 = vlaneseq
        %v1316 = vshrl.u32 %v1315, 7
        %v1317 = vsub.s32 %v761, %v1316
        %v1318 = vrot.slane %v1016, %v1317
        %v1319 = vlaneseq
        %v1320 = vshrl.u32 %v1319, 7
        %v1321 = vsub.s32 %v761, %v1320
        %v1322 = vrot.slane %v1021, %v1321
        %v1323 = vlaneseq
        %v1324 = vshrl.u32 %v1323, 7
        %v1325 = vsub.s32 %v761, %v1324
        %v1326 = vrot.slane %v1026, %v1325
        %v1327 = vlaneseq
        %v1328 = vshrl.u32 %v1327, 7
        %v1329 = vsub.s32 %v761, %v1328
        %v1330 = vrot.slane %v1031, %v1329
        %v1331 = vlaneseq
        %v1332 = vshrl.u32 %v1331, 7
        %v1333 = vsub.s32 %v761, %v1332
        %v1334 = vrot.slane %v1036, %v1333
        %v1335 = vlaneseq
        %v1336 = vshrl.u32 %v1335, 7
        %v1337 = vsub.s32 %v761, %v1336
        %v1338 = vrot.slane %v1041, %v1337
        %v1339 = vsel %vm794, %v1314, %v1310
        %v1340 = vsel %vm796, %v1318, %v1339
        %v1341 = vsel %vm798, %v1322, %v1340
        %v1342 = vsel %vm800, %v1326, %v1341
        %v1343 = vsel %vm802, %v1330, %v1342
        %v1344 = vsel %vm804, %v1334, %v1343
        %v1345 = vsel %vm806, %v1338, %v1344
        %1347 = vst.msk [vmem:[%s457] sm:$0xff] %vm809, %v1345
        %s1348 = sand.u32 %s218, 1
        %s1349 = scalar_lea.sflag [#allocation4], %s1348
        %s1350 = sand.u32 %s218, 1
        %s1351 = smul.addr %s1350, 8
        %s1352 = scalar_lea.vmem [#allocation13], %s1351
        %p1353 = scmp.lt.s32.totalorder %s32, 1
        %s1354 = scalar_select %p1353, %s32, 1
        %s1355 = smul.addr %s1354, 8
        %s1356 = scalar_lea.vmem %s9, %s1355
        // Predicated region
        $region77: #{tpu_custom_call.1} parent=51 // pred_check
          %p1357 = pneg %p228
        $region78: #{tpu_custom_call.1} parent=51 // pred_check_branch
          %1359 = sbr.rel (%p1357) target = $region80
        $region79: #{tpu_custom_call.1} parent=51 // pred_region
          %s1361 = ssub.s32 128, 128
          %1362 = vsyncadd %s1349, %s1361
          %s1363 = smul.addr %s32, 128
          %s1364 = scalar_lea.hbm %s8, %s1363
          %s1366 = sshll.u32 %s1352, 4
          %s1367 = int_to_ptr.vmem [resolvable:$true] %s1366
          %1369 = dma.vmem_to_hbm [thread:$0]  %s1367, 128, %s1364, %s1349
        $region80: #{tpu_custom_call.1} parent=51 // pred_fallthru
          _
        // Predicated region
        $region81: #{tpu_custom_call.1} parent=51 // pred_check
          %p1370 = pneg %p254
        $region82: #{tpu_custom_call.1} parent=51 // pred_check_branch
          %1372 = sbr.rel (%p1370) target = $region84
        $region83: #{tpu_custom_call.1} parent=51 // pred_region
          _
        $region84: #{tpu_custom_call.1} parent=51 // pred_fallthru
          _
      $region52: #{tpu_custom_call.1} parent=5 // pred_fallthru
        _
      %p1373 = scmp.le.s32.totalorder 2, %s27
      // Predicated region
      $region85: #{tpu_custom_call.1} parent=5 // pred_check
        %p1374 = pneg %p1373
      $region86: #{tpu_custom_call.1} parent=5 // pred_check_branch
        %1376 = sbr.rel (%p1374) target = $region88
      $region87: #{tpu_custom_call.1} parent=5 // pred_region
        %s1377 = ssub.s32 %s27, 2
        // Predicated region
        $region89: #{tpu_custom_call.1} parent=87 // pred_check
          %p1378 = pneg %p234
        $region90: #{tpu_custom_call.1} parent=87 // pred_check_branch
          %1380 = sbr.rel (%p1378) target = $region92
        $region91: #{tpu_custom_call.1} parent=87 // pred_region
          %s1381 = sand.u32 %s219, 1
          %s1382 = scalar_lea.sflag [#allocation4], %s1381
          %s1383 = sand.u32 %s219, 1
          %s1384 = smul.addr %s1383, 8
          %s1385 = scalar_lea.vmem [#allocation13], %s1384
          %1386 = dma.done %s1382, 128
        $region92: #{tpu_custom_call.1} parent=87 // pred_fallthru
          _
        // Predicated region
        $region93: #{tpu_custom_call.1} parent=87 // pred_check
          %p1387 = pneg %p260
        $region94: #{tpu_custom_call.1} parent=87 // pred_check_branch
          %1389 = sbr.rel (%p1387) target = $region96
        $region95: #{tpu_custom_call.1} parent=87 // pred_region
          %p1390 = scmp.lt.s32.totalorder %s33, 1
          %s1391 = scalar_select %p1390, %s33, 1
          %s1392 = smul.addr %s1391, 8
          %s1393 = scalar_lea.vmem %s9, %s1392
        $region96: #{tpu_custom_call.1} parent=87 // pred_fallthru
          _
      $region88: #{tpu_custom_call.1} parent=5 // pred_fallthru
        _
    $region6: #{tpu_custom_call.1} parent=1 // loop_footer
      %s31 = sadd.s32 1, %s27
    $region7: #{tpu_custom_call.1} parent=1 // loop_footer_branch
      %26 = sbr.rel target = $region3
    $region8: #{tpu_custom_call.1} parent=1 // loop_exit
      _
    %1394 = vsyncpa [#allocation3], 1
    %s1395 = scalar_lea.sflag [#allocation3], 1
    %1396 = vsyncpa %s1395, 1
    %1397 = vsyncpa [#allocation6], 1
    %s1398 = scalar_lea.sflag [#allocation6], 1
    %1399 = vsyncpa %s1398, 1
    %1400 = vsyncpa [#allocation9], 1
    %1401 = vsyncpa [#allocation12], 1
    %1402 = vsyncpa [#allocation4], 1
    %s1403 = scalar_lea.sflag [#allocation4], 1
    %1404 = vsyncpa %s1403, 1

</llo_original>
